<compile_context>
chip_gen: v5e
topology: v5e:2x2
jax: 0.10.0
libtpu: 0.0.40
codegen_flags: <defaults>
</compile_context>

<pallas_src>
import functools

import jax
import jax.numpy as jnp
from jax.experimental import pallas as pl
from jax.experimental.pallas import tpu as pltpu

AFFORDANCE_TO_ACTION = {
    'grasp': 'the man grasps the object',
    'contain': 'the man puts something into the object',
    'lift': 'the man lifts the object up',
    'openable': 'the man opens the object',
    'layable': 'the man lies down on the object',
    'sittable': 'the man sits on the object',
    'support': 'the man leans against the object',
    'wrap_grasp': 'the man wraps fingers around the object',
    'pourable': 'the man pours something from the object',
    'move': 'the man moves the object',
    'display': 'the man look at the object on display',
    'pushable': 'the man pushes the object',
    'pull': 'the man pulls the object',
    'listen': 'the man puts the object to the ear and listen',
    'wear': 'the man wears the object',
    'press': 'the man presses the object with a finger',
    'cut': 'the man cut something using the object',
    'stab': 'the man stabs something with the object',
}
AFFORDANCE_KEYS = list(AFFORDANCE_TO_ACTION.keys())
NUM_AFFORDANCES = len(AFFORDANCE_KEYS)  # 18


def _tensorcores_per_chip():
    """Best-effort TC count per chip (2 on v7x-style chips, else 1)."""
    try:
        kind = jax.devices()[0].device_kind.lower()
    except Exception:  # pragma: no cover
        return 1
    return 2 if ("v7" in kind) else 1


# ---------------------------------------------------------------------------
# Fused kernel.
#   Refs:
#     gaze_ref : SMEM (Bp, 3)                 gaze center per batch element
#     pts_ref  : VMEM (Bt, 3, K, N)           lane-dense coordinate planes
#     w_ref    : VMEM (2H + 2C, 2H) f32 slab  w1|b1|[w2h,w2g]|b2
#     pred_ref : VMEM (Bt, C, N)              sigmoid scores (class-padded)
#     avg_ref  : VMEM (Bt, C, 1)              per-class mean score
# ---------------------------------------------------------------------------
def _gal_kernel(gaze_ref, pts_ref, w_ref, pred_ref, avg_ref, *, Bt, K, H, C):
    b0 = pl.program_id(0) * Bt

    # Carve the packed weight slab with static, sublane-aligned slices
    # (zero-cost views; one DMA brought all five tensors in).
    w1 = w_ref[0:H, 0:3]                                        # (H, 3)
    b1 = w_ref[H:2 * H, 0:1]                                    # (H, 1)
    wcat = w_ref[2 * H:2 * H + C, 0:2 * H].astype(jnp.bfloat16)  # (C, 2H)
    b2 = w_ref[2 * H + C:2 * H + 2 * C, 0:1]                    # (C, 1)

    kidx = jax.lax.broadcasted_iota(jnp.int32, (K, 1), 0)       # (K, 1)

    for bb in range(Bt):                                        # static unroll
        px = pts_ref[bb, 0]                                     # (K, N)
        py = pts_ref[bb, 1]
        pz = pts_ref[bb, 2]

        # gaze center as SMEM scalars (no lane-sparse vector tile / selects)
        gx = gaze_ref[b0 + bb, 0]
        gy = gaze_ref[b0 + bb, 1]
        gz = gaze_ref[b0 + bb, 2]

        # ---- gaze-guided instance selection (VPU + cheap reduces) ----
        dx = px - gx
        dy = py - gy
        dz = pz - gz
        d = jnp.sqrt(dx * dx + dy * dy + dz * dz)               # (K, N)
        avg = jnp.mean(d, axis=-1, keepdims=True)               # (K, 1)

        min_val = jnp.min(avg, axis=0, keepdims=True)           # (1, 1)
        first_min = jnp.min(jnp.where(avg <= min_val, kidx, K),
                            axis=0, keepdims=True)              # first-min tie-break
        onehot = (kidx == first_min).astype(px.dtype)           # (K, 1)

        # one-hot contraction over K = gather of the winning instance
        x0 = jnp.sum(px * onehot, axis=0, keepdims=True)        # (1, N)
        x1 = jnp.sum(py * onehot, axis=0, keepdims=True)
        x2 = jnp.sum(pz * onehot, axis=0, keepdims=True)

        # ---- affordance inference on the selected point cloud ----
        x0 = x0 - jnp.mean(x0, axis=-1, keepdims=True)          # centroid-center
        x1 = x1 - jnp.mean(x1, axis=-1, keepdims=True)
        x2 = x2 - jnp.mean(x2, axis=-1, keepdims=True)

        # First shared-MLP layer: contraction dim is 3 -> keep it off the MXU.
        h = w1[:, 0:1] * x0 + w1[:, 1:2] * x1 + w1[:, 2:3] * x2 + b1   # (H, N)
        h = jnp.maximum(h, 0.0)
        g = jnp.max(h, axis=-1, keepdims=True)                  # (H, 1) global feat

        # Fused output matmul: [C, 2H] x [2H, N] in bf16, f32 accumulate.
        rhs = jnp.concatenate(
            [h, jnp.broadcast_to(g, h.shape)], axis=0).astype(jnp.bfloat16)
        logits = jnp.dot(wcat, rhs, preferred_element_type=jnp.float32) + b2

        # sigmoid: exp (EUP) + approximate reciprocal (EUP).
        pred = pl.reciprocal(1.0 + jnp.exp(-logits), approx=True)   # (C, N)

        pred_ref[bb] = pred
        avg_ref[bb] = jnp.mean(pred, axis=-1, keepdims=True)     # (C, 1)


# ---------------------------------------------------------------------------
# Wrappers
# ---------------------------------------------------------------------------
def init_affordance_params(key, hidden=32, num_classes=NUM_AFFORDANCES):
    k1, k2, k3 = jax.random.split(key, 3)
    return dict(
        w1=0.1 * jax.random.normal(k1, (hidden, 3), jnp.float32),
        b1=jnp.zeros((hidden, 1), jnp.float32),
        w2h=0.1 * jax.random.normal(k2, (num_classes, hidden), jnp.float32),
        w2g=0.1 * jax.random.normal(k3, (num_classes, hidden), jnp.float32),
        b2=jnp.zeros((num_classes, 1), jnp.float32),
    )


def gaze_guided_affordance_forward(gaze, scene_pcs, params):
    """gaze: [B, S, P, 3], scene_pcs: [B, K, N, 3].

    Returns (pred [B, N, 18], avg_score [B, 18]).  Pure device computation
    (jit-friendly); textual affordances are resolved by `textual_from_scores`
    outside the hot path.
    """
    B, K, N, _ = scene_pcs.shape
    H = params["w1"].shape[0]
    C = params["b2"].shape[0]
    Cpad = pl.cdiv(C, 8) * 8          # 18 -> 24: full-sublane output tiles

    # Batch elements per grid step: fill the grid on 1-TC chips, keep >=2
    # "parallel" steps on multi-TC chips (v7x) so both TensorCores stay busy.
    n_tc = _tensorcores_per_chip()
    Bt = min(8, max(1, pl.cdiv(B, n_tc)))
    grid_b = pl.cdiv(B, Bt)
    Bp = grid_b * Bt

    # Layout plumbing (outside the kernel): points as a single packed
    # [B, 3, K, N] array (N on the 128-wide lane axis), gaze centers as an
    # SMEM scalar table.  current_gaze = gaze[b, 0, 0, :] as in the PyTorch code.
    pts = jnp.transpose(scene_pcs, (0, 3, 1, 2)).astype(jnp.float32)   # (B,3,K,N)
    gaze_center = gaze[:, 0, 0, :].astype(jnp.float32)                  # (B,3)
    if Bp > B:
        pts = jnp.pad(pts, ((0, Bp - B), (0, 0), (0, 0), (0, 0)))
        gaze_center = jnp.pad(gaze_center, ((0, Bp - B), (0, 0)))

    # Pack the five tiny weight tensors into one f32 slab (one DMA).
    # Rows: [0:H]=w1(cols 0:3)  [H:2H]=b1(col 0)
    #       [2H:2H+Cpad]=concat(w2h,w2g)(cols 0:2H)  [2H+Cpad:2H+2Cpad]=b2(col 0)
    w2h = jnp.zeros((Cpad, H), jnp.float32).at[:C].set(params["w2h"])
    w2g = jnp.zeros((Cpad, H), jnp.float32).at[:C].set(params["w2g"])
    b2 = jnp.zeros((Cpad, 1), jnp.float32).at[:C].set(params["b2"])
    slab = jnp.zeros((2 * H + 2 * Cpad, 2 * H), jnp.float32)
    slab = slab.at[0:H, 0:3].set(params["w1"])
    slab = slab.at[H:2 * H, 0:1].set(params["b1"])
    slab = slab.at[2 * H:2 * H + Cpad, 0:H].set(w2h)
    slab = slab.at[2 * H:2 * H + Cpad, H:2 * H].set(w2g)
    slab = slab.at[2 * H + Cpad:2 * H + 2 * Cpad, 0:1].set(b2)

    kernel = functools.partial(_gal_kernel, Bt=Bt, K=K, H=H, C=Cpad)

    pred_cn, avg_cn = pl.pallas_call(
        kernel,
        out_shape=(jax.ShapeDtypeStruct((Bp, Cpad, N), jnp.float32),
                   jax.ShapeDtypeStruct((Bp, Cpad, 1), jnp.float32)),
        grid=(grid_b,),
        in_specs=[
            pl.BlockSpec(memory_space=pltpu.MemorySpace.SMEM),        # gaze (Bp,3)
            pl.BlockSpec((Bt, 3, K, N), lambda i: (i, 0, 0, 0)),      # points
            pl.BlockSpec((2 * H + 2 * Cpad, 2 * H), lambda i: (0, 0)),  # weights
        ],
        out_specs=(
            pl.BlockSpec((Bt, Cpad, N), lambda i: (i, 0, 0)),
            pl.BlockSpec((Bt, Cpad, 1), lambda i: (i, 0, 0)),
        ),
        compiler_params=pltpu.CompilerParams(
            dimension_semantics=("parallel",)),
    )(gaze_center, pts, slab)

    pred = jnp.transpose(pred_cn[:B, :C, :], (0, 2, 1))    # (B, N, 18)
    avg_score = avg_cn[:B, :C, 0]                           # (B, 18)
    return pred, avg_score


def textual_from_scores(avg_score):
    """Host-side (lazy) resolution of textual affordances; keep OUTSIDE jit."""
    idx = jax.device_get(jnp.argmax(avg_score, axis=-1))
    return [AFFORDANCE_TO_ACTION[AFFORDANCE_KEYS[int(i)]] for i in idx]


# ---------------------------------------------------------------------------
# Pure-JAX reference (same math) for a sanity check.
# ---------------------------------------------------------------------------
def _reference_forward(gaze, scene_pcs, params):
    gaze_center = gaze[:, 0, 0, :]                                       # [B,3]
    dist = jnp.linalg.norm(scene_pcs - gaze_center[:, None, None, :], axis=-1)
    idx = jnp.argmin(jnp.mean(dist, axis=-1), axis=-1)                   # [B]
    sel = jnp.take_along_axis(scene_pcs, idx[:, None, None, None], axis=1)[:, 0]
    xc = sel - jnp.mean(sel, axis=1, keepdims=True)                      # [B,N,3]
    h = jnp.maximum(jnp.einsum('bnk,hk->bhn', xc, params['w1'])
                    + params['b1'][None, :, :], 0.0)                     # [B,H,N]
    g = jnp.max(h, axis=-1)                                              # [B,H]
    logits = (jnp.einsum('ch,bhn->bcn', params['w2h'], h)
              + jnp.einsum('ch,bh->bc', params['w2g'], g)[:, :, None]
              + params['b2'][None, :, :])                                # [B,C,N]
    return jnp.transpose(jax.nn.sigmoid(logits), (0, 2, 1))              # [B,N,C]


if __name__ == "__main__":
    key = jax.random.PRNGKey(0)
    kg, kp, kw = jax.random.split(key, 3)

    B, S, P = 2, 8, 4          # gaze: batch, seq, points-per-frame
    K, N = 4, 256              # K candidate instances per scene, N points each

    gaze = jax.random.normal(kg, (B, S, P, 3), jnp.float32)
    # shift each instance so the gaze-distance selection is non-trivial
    scene_pcs = (jax.random.normal(kp, (B, K, N, 3), jnp.float32)
                 + jnp.arange(K, dtype=jnp.float32)[None, :, None, None])

    params = init_affordance_params(kw, hidden=32)

    fwd = jax.jit(gaze_guided_affordance_forward)
    visual_affordance, avg_score = fwd(gaze, scene_pcs, params)
    jax.block_until_ready((visual_affordance, avg_score))

    # textual strings resolved lazily, outside the jitted hot path
    textual_affordance = textual_from_scores(avg_score)

    assert visual_affordance.shape == (B, N, NUM_AFFORDANCES)
    assert avg_score.shape == (B, NUM_AFFORDANCES)
    assert len(textual_affordance) == B

    ref = _reference_forward(gaze, scene_pcs, params)
    ref_avg = jnp.mean(ref, axis=1)
    # bf16 MXU operands + approx-reciprocal sigmoid -> small deviation allowed
    max_err = float(jnp.max(jnp.abs(visual_affordance - ref)))
    avg_err = float(jnp.max(jnp.abs(avg_score - ref_avg)))
    assert max_err < 2e-2, f"max abs error vs reference: {max_err}"
    assert avg_err < 2e-2, f"max abs avg-score error vs reference: {avg_err}"

    print("KERNEL_OK")
</pallas_src>

<mosaic_0001>
module attributes {stable_mosaic.version = 11 : i64} {
  func.func @_gal_kernel(%arg0: i32, %arg1: memref<2x3xf32, #tpu.memory_space<smem>>, %arg2: memref<2x3x4x256xf32, #tpu.memory_space<vmem>>, %arg3: memref<112x64xf32, #tpu.memory_space<vmem>>, %arg4: memref<2x24x256xf32, #tpu.memory_space<vmem>>, %arg5: memref<2x24x1xf32, #tpu.memory_space<vmem>>) attributes {dimension_semantics = [#tpu.dimension_semantics<parallel>], iteration_bounds = array<i64: 1>, scalar_prefetch = 0 : i64, scratch_operands = 0 : i64, tpu.core_type = #tpu.core_type<tc>, window_params = [{transform_indices = @transform_0, window_bounds = array<i64: 2, 3>}, {transform_indices = @transform_1, window_bounds = array<i64: 2, 3, 4, 256>}, {pipeline_mode = #tpu.pipeline_mode<synchronous>, transform_indices = @transform_2, window_bounds = array<i64: 112, 64>}, {transform_indices = @transform_3, window_bounds = array<i64: 2, 24, 256>}, {transform_indices = @transform_4, window_bounds = array<i64: 2, 24, 1>}]} {
    %c2_i32 = arith.constant 2 : i32
    %0 = arith.muli %arg0, %c2_i32 : i32
    %c0 = arith.constant 0 : index
    %c0_0 = arith.constant 0 : index
    %1 = vector.load %arg3[%c0, %c0_0] : memref<112x64xf32, #tpu.memory_space<vmem>>, vector<32x3xf32>
    %c32 = arith.constant 32 : index
    %c0_1 = arith.constant 0 : index
    %2 = vector.load %arg3[%c32, %c0_1] : memref<112x64xf32, #tpu.memory_space<vmem>>, vector<32x1xf32>
    %c64 = arith.constant 64 : index
    %c0_2 = arith.constant 0 : index
    %3 = vector.load %arg3[%c64, %c0_2] : memref<112x64xf32, #tpu.memory_space<vmem>>, vector<24x64xf32>
    %4 = arith.truncf %3 : vector<24x64xf32> to vector<24x64xbf16>
    %c88 = arith.constant 88 : index
    %c0_3 = arith.constant 0 : index
    %5 = vector.load %arg3[%c88, %c0_3] : memref<112x64xf32, #tpu.memory_space<vmem>>, vector<24x1xf32>
    %6 = tpu.iota {dimensions = array<i32: 0>} : vector<4x1xi32>
    %c0_4 = arith.constant 0 : index
    %c0_5 = arith.constant 0 : index
    %c0_6 = arith.constant 0 : index
    %c0_7 = arith.constant 0 : index
    %7 = vector.load %arg2[%c0_4, %c0_5, %c0_6, %c0_7] : memref<2x3x4x256xf32, #tpu.memory_space<vmem>>, vector<1x1x4x256xf32>
    %8 = vector.shape_cast %7 : vector<1x1x4x256xf32> to vector<4x256xf32>
    %c0_8 = arith.constant 0 : index
    %c1 = arith.constant 1 : index
    %c0_9 = arith.constant 0 : index
    %c0_10 = arith.constant 0 : index
    %9 = vector.load %arg2[%c0_8, %c1, %c0_9, %c0_10] : memref<2x3x4x256xf32, #tpu.memory_space<vmem>>, vector<1x1x4x256xf32>
    %10 = vector.shape_cast %9 : vector<1x1x4x256xf32> to vector<4x256xf32>
    %c0_11 = arith.constant 0 : index
    %c2 = arith.constant 2 : index
    %c0_12 = arith.constant 0 : index
    %c0_13 = arith.constant 0 : index
    %11 = vector.load %arg2[%c0_11, %c2, %c0_12, %c0_13] : memref<2x3x4x256xf32, #tpu.memory_space<vmem>>, vector<1x1x4x256xf32>
    %12 = vector.shape_cast %11 : vector<1x1x4x256xf32> to vector<4x256xf32>
    %c0_i32 = arith.constant 0 : i32
    %13 = arith.addi %0, %c0_i32 : i32
    %14 = arith.index_cast %13 : i32 to index
    %c0_14 = arith.constant 0 : index
    %15 = memref.load %arg1[%14, %c0_14] : memref<2x3xf32, #tpu.memory_space<smem>>
    %c0_i32_15 = arith.constant 0 : i32
    %16 = arith.addi %0, %c0_i32_15 : i32
    %17 = arith.index_cast %16 : i32 to index
    %c1_16 = arith.constant 1 : index
    %18 = memref.load %arg1[%17, %c1_16] : memref<2x3xf32, #tpu.memory_space<smem>>
    %c0_i32_17 = arith.constant 0 : i32
    %19 = arith.addi %0, %c0_i32_17 : i32
    %20 = arith.index_cast %19 : i32 to index
    %c2_18 = arith.constant 2 : index
    %21 = memref.load %arg1[%20, %c2_18] : memref<2x3xf32, #tpu.memory_space<smem>>
    %22 = vector.broadcast %15 : f32 to vector<4x256xf32>
    %23 = arith.subf %8, %22 : vector<4x256xf32>
    %24 = vector.broadcast %18 : f32 to vector<4x256xf32>
    %25 = arith.subf %10, %24 : vector<4x256xf32>
    %26 = vector.broadcast %21 : f32 to vector<4x256xf32>
    %27 = arith.subf %12, %26 : vector<4x256xf32>
    %28 = arith.mulf %23, %23 : vector<4x256xf32>
    %29 = arith.mulf %25, %25 : vector<4x256xf32>
    %30 = arith.addf %28, %29 : vector<4x256xf32>
    %31 = arith.mulf %27, %27 : vector<4x256xf32>
    %32 = arith.addf %30, %31 : vector<4x256xf32>
    %33 = math.sqrt %32 : vector<4x256xf32>
    %cst = arith.constant dense<0.000000e+00> : vector<4xf32>
    %34 = vector.multi_reduction <add>, %33, %cst [1] : vector<4x256xf32> to vector<4xf32>
    %35 = vector.shape_cast %34 : vector<4xf32> to vector<4x1xf32>
    %cst_19 = arith.constant 2.560000e+02 : f32
    %36 = vector.broadcast %cst_19 : f32 to vector<4x1xf32>
    %37 = arith.divf %35, %36 : vector<4x1xf32>
    %cst_20 = arith.constant dense<0x7F800000> : vector<1xf32>
    %38 = vector.multi_reduction <minimumf>, %37, %cst_20 [0] : vector<4x1xf32> to vector<1xf32>
    %39 = vector.shape_cast %38 : vector<1xf32> to vector<1x1xf32>
    %40 = vector.broadcast %39 : vector<1x1xf32> to vector<4x1xf32>
    %41 = arith.cmpf ole, %37, %40 : vector<4x1xf32>
    %c4_i32 = arith.constant 4 : i32
    %42 = vector.broadcast %c4_i32 : i32 to vector<4x1xi32>
    %43 = arith.select %41, %6, %42 : vector<4x1xi1>, vector<4x1xi32>
    %cst_21 = arith.constant dense<2147483647> : vector<1xi32>
    %44 = vector.multi_reduction <minsi>, %43, %cst_21 [0] : vector<4x1xi32> to vector<1xi32>
    %45 = vector.shape_cast %44 : vector<1xi32> to vector<1x1xi32>
    %46 = vector.broadcast %45 : vector<1x1xi32> to vector<4x1xi32>
    %47 = arith.cmpi eq, %6, %46 : vector<4x1xi32>
    %48 = arith.extui %47 : vector<4x1xi1> to vector<4x1xi32>
    %49 = arith.sitofp %48 : vector<4x1xi32> to vector<4x1xf32>
    %50 = vector.broadcast %49 : vector<4x1xf32> to vector<4x256xf32>
    %51 = arith.mulf %8, %50 : vector<4x256xf32>
    %cst_22 = arith.constant dense<0.000000e+00> : vector<256xf32>
    %52 = vector.multi_reduction <add>, %51, %cst_22 [0] : vector<4x256xf32> to vector<256xf32>
    %53 = vector.shape_cast %52 : vector<256xf32> to vector<1x256xf32>
    %54 = vector.broadcast %49 : vector<4x1xf32> to vector<4x256xf32>
    %55 = arith.mulf %10, %54 : vector<4x256xf32>
    %cst_23 = arith.constant dense<0.000000e+00> : vector<256xf32>
    %56 = vector.multi_reduction <add>, %55, %cst_23 [0] : vector<4x256xf32> to vector<256xf32>
    %57 = vector.shape_cast %56 : vector<256xf32> to vector<1x256xf32>
    %58 = vector.broadcast %49 : vector<4x1xf32> to vector<4x256xf32>
    %59 = arith.mulf %12, %58 : vector<4x256xf32>
    %cst_24 = arith.constant dense<0.000000e+00> : vector<256xf32>
    %60 = vector.multi_reduction <add>, %59, %cst_24 [0] : vector<4x256xf32> to vector<256xf32>
    %61 = vector.shape_cast %60 : vector<256xf32> to vector<1x256xf32>
    %cst_25 = arith.constant dense<0.000000e+00> : vector<1xf32>
    %62 = vector.multi_reduction <add>, %53, %cst_25 [1] : vector<1x256xf32> to vector<1xf32>
    %63 = vector.shape_cast %62 : vector<1xf32> to vector<1x1xf32>
    %cst_26 = arith.constant 2.560000e+02 : f32
    %64 = vector.broadcast %cst_26 : f32 to vector<1x1xf32>
    %65 = arith.divf %63, %64 : vector<1x1xf32>
    %66 = vector.broadcast %65 : vector<1x1xf32> to vector<1x256xf32>
    %67 = arith.subf %53, %66 : vector<1x256xf32>
    %cst_27 = arith.constant dense<0.000000e+00> : vector<1xf32>
    %68 = vector.multi_reduction <add>, %57, %cst_27 [1] : vector<1x256xf32> to vector<1xf32>
    %69 = vector.shape_cast %68 : vector<1xf32> to vector<1x1xf32>
    %cst_28 = arith.constant 2.560000e+02 : f32
    %70 = vector.broadcast %cst_28 : f32 to vector<1x1xf32>
    %71 = arith.divf %69, %70 : vector<1x1xf32>
    %72 = vector.broadcast %71 : vector<1x1xf32> to vector<1x256xf32>
    %73 = arith.subf %57, %72 : vector<1x256xf32>
    %cst_29 = arith.constant dense<0.000000e+00> : vector<1xf32>
    %74 = vector.multi_reduction <add>, %61, %cst_29 [1] : vector<1x256xf32> to vector<1xf32>
    %75 = vector.shape_cast %74 : vector<1xf32> to vector<1x1xf32>
    %cst_30 = arith.constant 2.560000e+02 : f32
    %76 = vector.broadcast %cst_30 : f32 to vector<1x1xf32>
    %77 = arith.divf %75, %76 : vector<1x1xf32>
    %78 = vector.broadcast %77 : vector<1x1xf32> to vector<1x256xf32>
    %79 = arith.subf %61, %78 : vector<1x256xf32>
    %80 = vector.extract_strided_slice %1 {offsets = [0, 0], sizes = [32, 1], strides = [1, 1]} : vector<32x3xf32> to vector<32x1xf32>
    %81 = vector.broadcast %80 : vector<32x1xf32> to vector<32x256xf32>
    %82 = vector.broadcast %67 : vector<1x256xf32> to vector<32x256xf32>
    %83 = arith.mulf %81, %82 : vector<32x256xf32>
    %84 = vector.extract_strided_slice %1 {offsets = [0, 1], sizes = [32, 1], strides = [1, 1]} : vector<32x3xf32> to vector<32x1xf32>
    %85 = vector.broadcast %84 : vector<32x1xf32> to vector<32x256xf32>
    %86 = vector.broadcast %73 : vector<1x256xf32> to vector<32x256xf32>
    %87 = arith.mulf %85, %86 : vector<32x256xf32>
    %88 = arith.addf %83, %87 : vector<32x256xf32>
    %89 = vector.extract_strided_slice %1 {offsets = [0, 2], sizes = [32, 1], strides = [1, 1]} : vector<32x3xf32> to vector<32x1xf32>
    %90 = vector.broadcast %89 : vector<32x1xf32> to vector<32x256xf32>
    %91 = vector.broadcast %79 : vector<1x256xf32> to vector<32x256xf32>
    %92 = arith.mulf %90, %91 : vector<32x256xf32>
    %93 = arith.addf %88, %92 : vector<32x256xf32>
    %94 = vector.broadcast %2 : vector<32x1xf32> to vector<32x256xf32>
    %95 = arith.addf %93, %94 : vector<32x256xf32>
    %cst_31 = arith.constant 0.000000e+00 : f32
    %96 = vector.broadcast %cst_31 : f32 to vector<32x256xf32>
    %97 = arith.maximumf %95, %96 : vector<32x256xf32>
    %cst_32 = arith.constant dense<0xFF800000> : vector<32xf32>
    %98 = vector.multi_reduction <maximumf>, %97, %cst_32 [1] : vector<32x256xf32> to vector<32xf32>
    %99 = vector.shape_cast %98 : vector<32xf32> to vector<32x1xf32>
    %100 = vector.shape_cast %99 : vector<32x1xf32> to vector<32x1xf32>
    %101 = vector.broadcast %100 : vector<32x1xf32> to vector<32x256xf32>
    %102 = tpu.concatenate %97, %101 in 0 : vector<32x256xf32>, vector<32x256xf32> -> vector<64x256xf32>
    %103 = arith.truncf %102 : vector<64x256xf32> to vector<64x256xbf16>
    %cst_33 = arith.constant dense<0.000000e+00> : vector<24x256xf32>
    %104 = tpu.matmul %4, %103, %cst_33 {dimension_numbers = #tpu.dot_dimension_numbers<[1], [0], [0], [1], [0, 0, 1, 1], [], []>} : vector<24x64xbf16>, vector<64x256xbf16>, vector<24x256xf32> -> vector<24x256xf32>
    %105 = vector.broadcast %5 : vector<24x1xf32> to vector<24x256xf32>
    %106 = arith.addf %104, %105 : vector<24x256xf32>
    %cst_34 = arith.constant 0.000000e+00 : f32
    %107 = vector.broadcast %cst_34 : f32 to vector<24x256xf32>
    %108 = arith.subf %107, %106 : vector<24x256xf32>
    %109 = math.exp %108 : vector<24x256xf32>
    %cst_35 = arith.constant 1.000000e+00 : f32
    %110 = vector.broadcast %cst_35 : f32 to vector<24x256xf32>
    %111 = arith.addf %110, %109 : vector<24x256xf32>
    %112 = tpu.reciprocal %111 {approx = true} : vector<24x256xf32> -> vector<24x256xf32>
    %c0_36 = arith.constant 0 : index
    %c0_37 = arith.constant 0 : index
    %c0_38 = arith.constant 0 : index
    %113 = vector.load %arg4[%c0_36, %c0_37, %c0_38] : memref<2x24x256xf32, #tpu.memory_space<vmem>>, vector<1x24x256xf32>
    %114 = vector.shape_cast %113 : vector<1x24x256xf32> to vector<24x256xf32>
    %115 = vector.shape_cast %112 : vector<24x256xf32> to vector<1x24x256xf32>
    tpu.vector_store %arg4[%c0_36, %c0_37, %c0_38], %115 {strides = array<i32>} : memref<2x24x256xf32, #tpu.memory_space<vmem>>, vector<1x24x256xf32>,
    %cst_39 = arith.constant dense<0.000000e+00> : vector<24xf32>
    %116 = vector.multi_reduction <add>, %112, %cst_39 [1] : vector<24x256xf32> to vector<24xf32>
    %117 = vector.shape_cast %116 : vector<24xf32> to vector<24x1xf32>
    %cst_40 = arith.constant 2.560000e+02 : f32
    %118 = vector.broadcast %cst_40 : f32 to vector<24x1xf32>
    %119 = arith.divf %117, %118 : vector<24x1xf32>
    %c0_41 = arith.constant 0 : index
    %c0_42 = arith.constant 0 : index
    %c0_43 = arith.constant 0 : index
    %120 = vector.load %arg5[%c0_41, %c0_42, %c0_43] : memref<2x24x1xf32, #tpu.memory_space<vmem>>, vector<1x24x1xf32>
    %121 = vector.shape_cast %120 : vector<1x24x1xf32> to vector<24x1xf32>
    %122 = vector.shape_cast %119 : vector<24x1xf32> to vector<1x24x1xf32>
    tpu.vector_store %arg5[%c0_41, %c0_42, %c0_43], %122 {strides = array<i32>} : memref<2x24x1xf32, #tpu.memory_space<vmem>>, vector<1x24x1xf32>,
    %c1_44 = arith.constant 1 : index
    %c0_45 = arith.constant 0 : index
    %c0_46 = arith.constant 0 : index
    %c0_47 = arith.constant 0 : index
    %123 = vector.load %arg2[%c1_44, %c0_45, %c0_46, %c0_47] : memref<2x3x4x256xf32, #tpu.memory_space<vmem>>, vector<1x1x4x256xf32>
    %124 = vector.shape_cast %123 : vector<1x1x4x256xf32> to vector<4x256xf32>
    %c1_48 = arith.constant 1 : index
    %c1_49 = arith.constant 1 : index
    %c0_50 = arith.constant 0 : index
    %c0_51 = arith.constant 0 : index
    %125 = vector.load %arg2[%c1_48, %c1_49, %c0_50, %c0_51] : memref<2x3x4x256xf32, #tpu.memory_space<vmem>>, vector<1x1x4x256xf32>
    %126 = vector.shape_cast %125 : vector<1x1x4x256xf32> to vector<4x256xf32>
    %c1_52 = arith.constant 1 : index
    %c2_53 = arith.constant 2 : index
    %c0_54 = arith.constant 0 : index
    %c0_55 = arith.constant 0 : index
    %127 = vector.load %arg2[%c1_52, %c2_53, %c0_54, %c0_55] : memref<2x3x4x256xf32, #tpu.memory_space<vmem>>, vector<1x1x4x256xf32>
    %128 = vector.shape_cast %127 : vector<1x1x4x256xf32> to vector<4x256xf32>
    %c1_i32 = arith.constant 1 : i32
    %129 = arith.addi %0, %c1_i32 : i32
    %130 = arith.index_cast %129 : i32 to index
    %c0_56 = arith.constant 0 : index
    %131 = memref.load %arg1[%130, %c0_56] : memref<2x3xf32, #tpu.memory_space<smem>>
    %c1_i32_57 = arith.constant 1 : i32
    %132 = arith.addi %0, %c1_i32_57 : i32
    %133 = arith.index_cast %132 : i32 to index
    %c1_58 = arith.constant 1 : index
    %134 = memref.load %arg1[%133, %c1_58] : memref<2x3xf32, #tpu.memory_space<smem>>
    %c1_i32_59 = arith.constant 1 : i32
    %135 = arith.addi %0, %c1_i32_59 : i32
    %136 = arith.index_cast %135 : i32 to index
    %c2_60 = arith.constant 2 : index
    %137 = memref.load %arg1[%136, %c2_60] : memref<2x3xf32, #tpu.memory_space<smem>>
    %138 = vector.broadcast %131 : f32 to vector<4x256xf32>
    %139 = arith.subf %124, %138 : vector<4x256xf32>
    %140 = vector.broadcast %134 : f32 to vector<4x256xf32>
    %141 = arith.subf %126, %140 : vector<4x256xf32>
    %142 = vector.broadcast %137 : f32 to vector<4x256xf32>
    %143 = arith.subf %128, %142 : vector<4x256xf32>
    %144 = arith.mulf %139, %139 : vector<4x256xf32>
    %145 = arith.mulf %141, %141 : vector<4x256xf32>
    %146 = arith.addf %144, %145 : vector<4x256xf32>
    %147 = arith.mulf %143, %143 : vector<4x256xf32>
    %148 = arith.addf %146, %147 : vector<4x256xf32>
    %149 = math.sqrt %148 : vector<4x256xf32>
    %cst_61 = arith.constant dense<0.000000e+00> : vector<4xf32>
    %150 = vector.multi_reduction <add>, %149, %cst_61 [1] : vector<4x256xf32> to vector<4xf32>
    %151 = vector.shape_cast %150 : vector<4xf32> to vector<4x1xf32>
    %cst_62 = arith.constant 2.560000e+02 : f32
    %152 = vector.broadcast %cst_62 : f32 to vector<4x1xf32>
    %153 = arith.divf %151, %152 : vector<4x1xf32>
    %cst_63 = arith.constant dense<0x7F800000> : vector<1xf32>
    %154 = vector.multi_reduction <minimumf>, %153, %cst_63 [0] : vector<4x1xf32> to vector<1xf32>
    %155 = vector.shape_cast %154 : vector<1xf32> to vector<1x1xf32>
    %156 = vector.broadcast %155 : vector<1x1xf32> to vector<4x1xf32>
    %157 = arith.cmpf ole, %153, %156 : vector<4x1xf32>
    %c4_i32_64 = arith.constant 4 : i32
    %158 = vector.broadcast %c4_i32_64 : i32 to vector<4x1xi32>
    %159 = arith.select %157, %6, %158 : vector<4x1xi1>, vector<4x1xi32>
    %cst_65 = arith.constant dense<2147483647> : vector<1xi32>
    %160 = vector.multi_reduction <minsi>, %159, %cst_65 [0] : vector<4x1xi32> to vector<1xi32>
    %161 = vector.shape_cast %160 : vector<1xi32> to vector<1x1xi32>
    %162 = vector.broadcast %161 : vector<1x1xi32> to vector<4x1xi32>
    %163 = arith.cmpi eq, %6, %162 : vector<4x1xi32>
    %164 = arith.extui %163 : vector<4x1xi1> to vector<4x1xi32>
    %165 = arith.sitofp %164 : vector<4x1xi32> to vector<4x1xf32>
    %166 = vector.broadcast %165 : vector<4x1xf32> to vector<4x256xf32>
    %167 = arith.mulf %124, %166 : vector<4x256xf32>
    %cst_66 = arith.constant dense<0.000000e+00> : vector<256xf32>
    %168 = vector.multi_reduction <add>, %167, %cst_66 [0] : vector<4x256xf32> to vector<256xf32>
    %169 = vector.shape_cast %168 : vector<256xf32> to vector<1x256xf32>
    %170 = vector.broadcast %165 : vector<4x1xf32> to vector<4x256xf32>
    %171 = arith.mulf %126, %170 : vector<4x256xf32>
    %cst_67 = arith.constant dense<0.000000e+00> : vector<256xf32>
    %172 = vector.multi_reduction <add>, %171, %cst_67 [0] : vector<4x256xf32> to vector<256xf32>
    %173 = vector.shape_cast %172 : vector<256xf32> to vector<1x256xf32>
    %174 = vector.broadcast %165 : vector<4x1xf32> to vector<4x256xf32>
    %175 = arith.mulf %128, %174 : vector<4x256xf32>
    %cst_68 = arith.constant dense<0.000000e+00> : vector<256xf32>
    %176 = vector.multi_reduction <add>, %175, %cst_68 [0] : vector<4x256xf32> to vector<256xf32>
    %177 = vector.shape_cast %176 : vector<256xf32> to vector<1x256xf32>
    %cst_69 = arith.constant dense<0.000000e+00> : vector<1xf32>
    %178 = vector.multi_reduction <add>, %169, %cst_69 [1] : vector<1x256xf32> to vector<1xf32>
    %179 = vector.shape_cast %178 : vector<1xf32> to vector<1x1xf32>
    %cst_70 = arith.constant 2.560000e+02 : f32
    %180 = vector.broadcast %cst_70 : f32 to vector<1x1xf32>
    %181 = arith.divf %179, %180 : vector<1x1xf32>
    %182 = vector.broadcast %181 : vector<1x1xf32> to vector<1x256xf32>
    %183 = arith.subf %169, %182 : vector<1x256xf32>
    %cst_71 = arith.constant dense<0.000000e+00> : vector<1xf32>
    %184 = vector.multi_reduction <add>, %173, %cst_71 [1] : vector<1x256xf32> to vector<1xf32>
    %185 = vector.shape_cast %184 : vector<1xf32> to vector<1x1xf32>
    %cst_72 = arith.constant 2.560000e+02 : f32
    %186 = vector.broadcast %cst_72 : f32 to vector<1x1xf32>
    %187 = arith.divf %185, %186 : vector<1x1xf32>
    %188 = vector.broadcast %187 : vector<1x1xf32> to vector<1x256xf32>
    %189 = arith.subf %173, %188 : vector<1x256xf32>
    %cst_73 = arith.constant dense<0.000000e+00> : vector<1xf32>
    %190 = vector.multi_reduction <add>, %177, %cst_73 [1] : vector<1x256xf32> to vector<1xf32>
    %191 = vector.shape_cast %190 : vector<1xf32> to vector<1x1xf32>
    %cst_74 = arith.constant 2.560000e+02 : f32
    %192 = vector.broadcast %cst_74 : f32 to vector<1x1xf32>
    %193 = arith.divf %191, %192 : vector<1x1xf32>
    %194 = vector.broadcast %193 : vector<1x1xf32> to vector<1x256xf32>
    %195 = arith.subf %177, %194 : vector<1x256xf32>
    %196 = vector.extract_strided_slice %1 {offsets = [0, 0], sizes = [32, 1], strides = [1, 1]} : vector<32x3xf32> to vector<32x1xf32>
    %197 = vector.broadcast %196 : vector<32x1xf32> to vector<32x256xf32>
    %198 = vector.broadcast %183 : vector<1x256xf32> to vector<32x256xf32>
    %199 = arith.mulf %197, %198 : vector<32x256xf32>
    %200 = vector.extract_strided_slice %1 {offsets = [0, 1], sizes = [32, 1], strides = [1, 1]} : vector<32x3xf32> to vector<32x1xf32>
    %201 = vector.broadcast %200 : vector<32x1xf32> to vector<32x256xf32>
    %202 = vector.broadcast %189 : vector<1x256xf32> to vector<32x256xf32>
    %203 = arith.mulf %201, %202 : vector<32x256xf32>
    %204 = arith.addf %199, %203 : vector<32x256xf32>
    %205 = vector.extract_strided_slice %1 {offsets = [0, 2], sizes = [32, 1], strides = [1, 1]} : vector<32x3xf32> to vector<32x1xf32>
    %206 = vector.broadcast %205 : vector<32x1xf32> to vector<32x256xf32>
    %207 = vector.broadcast %195 : vector<1x256xf32> to vector<32x256xf32>
    %208 = arith.mulf %206, %207 : vector<32x256xf32>
    %209 = arith.addf %204, %208 : vector<32x256xf32>
    %210 = vector.broadcast %2 : vector<32x1xf32> to vector<32x256xf32>
    %211 = arith.addf %209, %210 : vector<32x256xf32>
    %cst_75 = arith.constant 0.000000e+00 : f32
    %212 = vector.broadcast %cst_75 : f32 to vector<32x256xf32>
    %213 = arith.maximumf %211, %212 : vector<32x256xf32>
    %cst_76 = arith.constant dense<0xFF800000> : vector<32xf32>
    %214 = vector.multi_reduction <maximumf>, %213, %cst_76 [1] : vector<32x256xf32> to vector<32xf32>
    %215 = vector.shape_cast %214 : vector<32xf32> to vector<32x1xf32>
    %216 = vector.shape_cast %215 : vector<32x1xf32> to vector<32x1xf32>
    %217 = vector.broadcast %216 : vector<32x1xf32> to vector<32x256xf32>
    %218 = tpu.concatenate %213, %217 in 0 : vector<32x256xf32>, vector<32x256xf32> -> vector<64x256xf32>
    %219 = arith.truncf %218 : vector<64x256xf32> to vector<64x256xbf16>
    %cst_77 = arith.constant dense<0.000000e+00> : vector<24x256xf32>
    %220 = tpu.matmul %4, %219, %cst_77 {dimension_numbers = #tpu.dot_dimension_numbers<[1], [0], [0], [1], [0, 0, 1, 1], [], []>} : vector<24x64xbf16>, vector<64x256xbf16>, vector<24x256xf32> -> vector<24x256xf32>
    %221 = vector.broadcast %5 : vector<24x1xf32> to vector<24x256xf32>
    %222 = arith.addf %220, %221 : vector<24x256xf32>
    %cst_78 = arith.constant 0.000000e+00 : f32
    %223 = vector.broadcast %cst_78 : f32 to vector<24x256xf32>
    %224 = arith.subf %223, %222 : vector<24x256xf32>
    %225 = math.exp %224 : vector<24x256xf32>
    %cst_79 = arith.constant 1.000000e+00 : f32
    %226 = vector.broadcast %cst_79 : f32 to vector<24x256xf32>
    %227 = arith.addf %226, %225 : vector<24x256xf32>
    %228 = tpu.reciprocal %227 {approx = true} : vector<24x256xf32> -> vector<24x256xf32>
    %c1_80 = arith.constant 1 : index
    %c0_81 = arith.constant 0 : index
    %c0_82 = arith.constant 0 : index
    %229 = vector.load %arg4[%c1_80, %c0_81, %c0_82] : memref<2x24x256xf32, #tpu.memory_space<vmem>>, vector<1x24x256xf32>
    %230 = vector.shape_cast %229 : vector<1x24x256xf32> to vector<24x256xf32>
    %231 = vector.shape_cast %228 : vector<24x256xf32> to vector<1x24x256xf32>
    tpu.vector_store %arg4[%c1_80, %c0_81, %c0_82], %231 {strides = array<i32>} : memref<2x24x256xf32, #tpu.memory_space<vmem>>, vector<1x24x256xf32>,
    %cst_83 = arith.constant dense<0.000000e+00> : vector<24xf32>
    %232 = vector.multi_reduction <add>, %228, %cst_83 [1] : vector<24x256xf32> to vector<24xf32>
    %233 = vector.shape_cast %232 : vector<24xf32> to vector<24x1xf32>
    %cst_84 = arith.constant 2.560000e+02 : f32
    %234 = vector.broadcast %cst_84 : f32 to vector<24x1xf32>
    %235 = arith.divf %233, %234 : vector<24x1xf32>
    %c1_85 = arith.constant 1 : index
    %c0_86 = arith.constant 0 : index
    %c0_87 = arith.constant 0 : index
    %236 = vector.load %arg5[%c1_85, %c0_86, %c0_87] : memref<2x24x1xf32, #tpu.memory_space<vmem>>, vector<1x24x1xf32>
    %237 = vector.shape_cast %236 : vector<1x24x1xf32> to vector<24x1xf32>
    %238 = vector.shape_cast %235 : vector<24x1xf32> to vector<1x24x1xf32>
    tpu.vector_store %arg5[%c1_85, %c0_86, %c0_87], %238 {strides = array<i32>} : memref<2x24x1xf32, #tpu.memory_space<vmem>>, vector<1x24x1xf32>,
    return
  }
  func.func @transform_0(%arg0: i32) -> (i32, i32) {
    %c0_i32 = arith.constant 0 : i32
    %c0_i32_0 = arith.constant 0 : i32
    %c0_i32_1 = arith.constant 0 : i32
    return %c0_i32, %c0_i32_0 : i32, i32
  }
  func.func @transform_1(%arg0: i32) -> (i32, i32, i32, i32) {
    %c0_i32 = arith.constant 0 : i32
    %c0_i32_0 = arith.constant 0 : i32
    %c0_i32_1 = arith.constant 0 : i32
    %c0_i32_2 = arith.constant 0 : i32
    return %arg0, %c0_i32, %c0_i32_0, %c0_i32_1 : i32, i32, i32, i32
  }
  func.func @transform_2(%arg0: i32) -> (i32, i32) {
    %c0_i32 = arith.constant 0 : i32
    %c0_i32_0 = arith.constant 0 : i32
    %c0_i32_1 = arith.constant 0 : i32
    return %c0_i32, %c0_i32_0 : i32, i32
  }
  func.func @transform_3(%arg0: i32) -> (i32, i32, i32) {
    %c0_i32 = arith.constant 0 : i32
    %c0_i32_0 = arith.constant 0 : i32
    %c0_i32_1 = arith.constant 0 : i32
    return %arg0, %c0_i32, %c0_i32_0 : i32, i32, i32
  }
  func.func @transform_4(%arg0: i32) -> (i32, i32, i32) {
    %c0_i32 = arith.constant 0 : i32
    %c0_i32_0 = arith.constant 0 : i32
    %c0_i32_1 = arith.constant 0 : i32
    return %arg0, %c0_i32, %c0_i32_0 : i32, i32, i32
  }
}

</mosaic_0001>

<llo_original>
// kernel: gaze_guided_affordance_forward.1
$region0: #{gaze_guided_affordance_forward.1}
  #allocation0 [shape = 'u32[]', space=smem, size = 0x4, offset = 0x4, fixed_abs, tag = 'smem constant byte address 0x4 - core index']
  #allocation1 [shape = 'u32[72,128]{1,0:T(1,128)}', space=vmem, size = 0x9000, scoped, tag = 'internal scratch']
  %s0 = inlined_call_operand.vmem [shape: f32[2,3], index: 0, kind: input, shape index: {}]
  %s1 = inlined_call_operand.vmem [shape: f32[2,3,4,256], index: 1, kind: input, shape index: {}]
  %s2 = inlined_call_operand.vmem [shape: f32[112,64], index: 2, kind: input, shape index: {}]
  %s3 = inlined_call_operand.vmem [shape: f32[2,24,256], index: 3, kind: output, shape index: {0}]
  %s4 = inlined_call_operand.vmem [shape: f32[2,24,1], index: 4, kind: output, shape index: {1}]
  %5 = xla_tuple %s3, %s4
  %s6 = sld [smem:[#allocation0]]
  $region34: #{gaze_guided_affordance_forward.1} parent=0
    _
  %s8 = ssub.s32 1, %s6
  %s9 = scalar_select 0, %s8, %s6
  $region1: #{gaze_guided_affordance_forward.1} parent=0
    #allocation2 [shape = 'u8[1024]{0}', space=smem, size = 0x400, scoped, tag = 'input window, operand 0, single buffered']
    #allocation3 [shape = 's32[1]{0}', space=sflag, size = 0x4, scoped, tag = 'scoped memory for gaze_guided_affordance_forward.1']
    %10 = vsyncpa [#allocation3], 0
    // Predicated region
    $region2: #{gaze_guided_affordance_forward.1} parent=1 // pred_check
      _
    $region3: #{gaze_guided_affordance_forward.1} parent=1 // pred_check_branch
      %12 = sbr.rel (0) target = $region5
    $region4: #{gaze_guided_affordance_forward.1} parent=1 // pred_region
      %14 = vsyncadd [#allocation3], 0
      %s16 = sshll.u32 %s0, 4
      %s17 = int_to_ptr.vmem [resolvable:$true] %s16
      %19 = dma.vmem_to_smem %s17, 32, [#allocation2], [#allocation3]
    $region5: #{gaze_guided_affordance_forward.1} parent=1 // pred_fallthru
      _
    // Predicated region
    $region6: #{gaze_guided_affordance_forward.1} parent=1 // pred_check
      _
    $region7: #{gaze_guided_affordance_forward.1} parent=1 // pred_check_branch
      %21 = sbr.rel (0) target = $region9
    $region8: #{gaze_guided_affordance_forward.1} parent=1 // pred_region
      _
    $region9: #{gaze_guided_affordance_forward.1} parent=1 // pred_fallthru
      _
    // Predicated region
    $region10: #{gaze_guided_affordance_forward.1} parent=1 // pred_check
      _
    $region11: #{gaze_guided_affordance_forward.1} parent=1 // pred_check_branch
      %23 = sbr.rel (0) target = $region13
    $region12: #{gaze_guided_affordance_forward.1} parent=1 // pred_region
      _
    $region13: #{gaze_guided_affordance_forward.1} parent=1 // pred_fallthru
      _
    // Predicated region
    $region14: #{gaze_guided_affordance_forward.1} parent=1 // pred_check
      _
    $region15: #{gaze_guided_affordance_forward.1} parent=1 // pred_check_branch
      %25 = sbr.rel (0) target = $region17
    $region16: #{gaze_guided_affordance_forward.1} parent=1 // pred_region
      %27 = dma.done [#allocation3], 32
    $region17: #{gaze_guided_affordance_forward.1} parent=1 // pred_fallthru
      _
    %28 = sfence
    %s30 = smul.u32 0, 2
    %v31 = vld [vmem:[%s2] sm:$0xff]
    %v32 = vld [vmem:[%s2 + $0x8] sm:$0xff]
    %v33 = vld [vmem:[%s2 + $0x10] sm:$0xff]
    %v34 = vld [vmem:[%s2 + $0x18] sm:$0xff]
    %v35 = vld [vmem:[%s2 + $0x20] sm:$0xff]
    %v36 = vld [vmem:[%s2 + $0x28] sm:$0xff]
    %v37 = vld [vmem:[%s2 + $0x30] sm:$0xff]
    %v38 = vld [vmem:[%s2 + $0x38] sm:$0xff]
    %v39 = vld [vmem:[%s2 + $0x40] sm:$0xff]
    %v40 = vld [vmem:[%s2 + $0x48] sm:$0xff]
    %v41 = vld [vmem:[%s2 + $0x50] sm:$0xff]
    %v42 = vpack.c.bf16 %v40, %v39
    %v43 = vpack.c.bf16 %v41, %v41
    %v44 = vld [vmem:[%s2 + $0x58] sm:$0xff]
    %v45 = vld [vmem:[%s2 + $0x60] sm:$0xff]
    %v46 = vld [vmem:[%s2 + $0x68] sm:$0xff]
    %v47 = vlaneseq
    %v48 = vshrl.u32 %v47, 7
    %v49 = vld [vmem:[%s1] sm:$0xff]
    %s50 = scalar_lea.vmem %s1, 8
    %v51 = vld [vmem:[%s50] sm:$0xff]
    %s52 = scalar_lea.vmem %s1, 16
    %v53 = vld [vmem:[%s52] sm:$0xff]
    %s54 = smul.u32 %s30, 128
    %s55 = sld [smem:[#allocation2 + %s54]]
    %s56 = sadd.s32 %s54, 1
    %s57 = sld [smem:[#allocation2 + %s56]]
    %s58 = sadd.s32 %s54, 2
    %s59 = sld [smem:[#allocation2 + %s58]]
    %v60 = vstv %s55
    %v61 = vsub.f32 %v49, %v60
    %v62 = vstv %s57
    %v63 = vsub.f32 %v51, %v62
    %v64 = vstv %s59
    %v65 = vsub.f32 %v53, %v64
    %v66 = vmul.f32 %v61, %v61
    %v67 = vmul.f32 %v63, %v63
    %v68 = vadd.f32 %v66, %v67
    %v69 = vmul.f32 %v65, %v65
    %v70 = vadd.f32 %v68, %v69
    %v71 = vrsqrt.pop %v70
    %v72 = vmul.f32 %v71, %v70
    %v73 = vmul.f32 %v72, %v71
    %v74 = vmul.f32 0.5, %v73
    %v75 = vsub.f32 1.5, %v74
    %v76 = vmul.f32 %v71, %v75
    %v77 = vmul.f32 %v70, %v76
    %vm78 = vcmp.eq.f32.partialorder %v70, inf
    %v79 = vsel %vm78, %v70, %v77
    %vm80 = vcmp.eq.f32.partialorder %v70, 0.0
    %v81 = vand.u32 %v70, 2147483648
    %v82 = vsel %vm80, %v81, %v79
    %84 = vst [vmem:[#allocation1] ss:$2 sm:$0xff] %v82
    %v85 = vld.sshfl [vmem:[#allocation1] sm:$0xff pattern:$0x75316420]
    %v86 = vld.sshfl [vmem:[#allocation1 + $0x8] sm:$0xff pattern:$0x75316420]
    %vm89 = vcmask 1043456
    %v90 = vsel %vm89, %v85, 0.0
    %v91 = vsel %vm89, %v86, 0.0
    %v92 = vadd.f32 %v90, %v91
    %93 = vadd.xlane.f32.xlu0 %v92
    %v94 = vpop.xlane.xlu0 %93
    %v95 = vrcp.pop 256.0
    %v96 = vmul.f32 256.0, %v95
    %v97 = vsub.f32 1.0, %v96
    %v98 = vmul.f32 %v95, %v97
    %v99 = vadd.f32 %v95, %v98
    %vm100 = vweird.f32 %v95
    %v101 = vsel %vm100, %v95, %v99
    %v102 = vmul.f32 %v94, %v101
    %v103 = vsel %vm89, %v102, inf
    %v104 = vrot.slane %v103, 4
    %v105 = vmin.f32 %v103, %v104
    %v106 = vrot.slane %v105, 2
    %v107 = vmin.f32 %v105, %v106
    %v108 = vrot.slane %v107, 1
    %v109 = vmin.f32 %v107, %v108
    %vm110 = vcmp.le.f32.partialorder %v102, %v109
    %v111 = vsel %vm110, %v48, 4
    %v112 = vsel %vm89, %v111, 2147483647
    %v113 = vrot.slane %v112, 4
    %vm114 = vcmp.lt.s32.totalorder %v112, %v113
    %v115 = vsel %vm114, %v112, %v113
    %v116 = vrot.slane %v115, 2
    %vm117 = vcmp.lt.s32.totalorder %v115, %v116
    %v118 = vsel %vm117, %v115, %v116
    %v119 = vrot.slane %v118, 1
    %vm120 = vcmp.lt.s32.totalorder %v118, %v119
    %v121 = vsel %vm120, %v118, %v119
    %vm122 = vcmp.eq.s32.totalorder %v48, %v121
    %v123 = vsel %vm122, 1, 0
    %v124 = vcvt.s32.f32 %v123
    %v127 = vunpack.c.l.s4 839922192
    %v128 = vunpack.c.0.s8 %v127
    %v129 = vperm.slane %v124, %v128
    %v131 = vmul.f32 %v49, %v129
    %133 = vst [vmem:[#allocation1] ss:$2 sm:$0xff] %v131
    %v134 = vld.sshfl [vmem:[#allocation1] sm:$0xff pattern:$0x75316420]
    %v135 = vld.sshfl [vmem:[#allocation1 + $0x8] sm:$0xff pattern:$0x75316420]
    %v138 = vsel %vm89, %v134, 0.0
    %v139 = vrot.slane %v138, 4
    %v140 = vadd.f32 %v138, %v139
    %v141 = vrot.slane %v140, 2
    %v142 = vadd.f32 %v140, %v141
    %v143 = vrot.slane %v142, 1
    %v144 = vadd.f32 %v142, %v143
    %v145 = vsel %vm89, %v135, 0.0
    %v146 = vrot.slane %v145, 4
    %v147 = vadd.f32 %v145, %v146
    %v148 = vrot.slane %v147, 2
    %v149 = vadd.f32 %v147, %v148
    %v150 = vrot.slane %v149, 1
    %v151 = vadd.f32 %v149, %v150
    %v152 = vmul.f32 %v51, %v129
    %154 = vst [vmem:[#allocation1] ss:$2 sm:$0xff] %v152
    %v155 = vld.sshfl [vmem:[#allocation1] sm:$0xff pattern:$0x75316420]
    %v156 = vld.sshfl [vmem:[#allocation1 + $0x8] sm:$0xff pattern:$0x75316420]
    %v159 = vsel %vm89, %v155, 0.0
    %v160 = vrot.slane %v159, 4
    %v161 = vadd.f32 %v159, %v160
    %v162 = vrot.slane %v161, 2
    %v163 = vadd.f32 %v161, %v162
    %v164 = vrot.slane %v163, 1
    %v165 = vadd.f32 %v163, %v164
    %v166 = vsel %vm89, %v156, 0.0
    %v167 = vrot.slane %v166, 4
    %v168 = vadd.f32 %v166, %v167
    %v169 = vrot.slane %v168, 2
    %v170 = vadd.f32 %v168, %v169
    %v171 = vrot.slane %v170, 1
    %v172 = vadd.f32 %v170, %v171
    %v173 = vmul.f32 %v53, %v129
    %175 = vst [vmem:[#allocation1] ss:$2 sm:$0xff] %v173
    %v176 = vld.sshfl [vmem:[#allocation1] sm:$0xff pattern:$0x75316420]
    %v177 = vld.sshfl [vmem:[#allocation1 + $0x8] sm:$0xff pattern:$0x75316420]
    %v180 = vsel %vm89, %v176, 0.0
    %v181 = vrot.slane %v180, 4
    %v182 = vadd.f32 %v180, %v181
    %v183 = vrot.slane %v182, 2
    %v184 = vadd.f32 %v182, %v183
    %v185 = vrot.slane %v184, 1
    %v186 = vadd.f32 %v184, %v185
    %v187 = vsel %vm89, %v177, 0.0
    %v188 = vrot.slane %v187, 4
    %v189 = vadd.f32 %v187, %v188
    %v190 = vrot.slane %v189, 2
    %v191 = vadd.f32 %v189, %v190
    %v192 = vrot.slane %v191, 1
    %v193 = vadd.f32 %v191, %v192
    %v194 = vadd.f32 %v144, %v151
    %195 = vadd.xlane.f32.xlu0 %v194
    %v196 = vpop.xlane.xlu0 %195
    %v197 = vmul.f32 %v196, %v101
    %v198 = vsub.f32 %v144, %v197
    %v199 = vsub.f32 %v151, %v197
    %v200 = vadd.f32 %v165, %v172
    %201 = vadd.xlane.f32.xlu0 %v200
    %v202 = vpop.xlane.xlu0 %201
    %v203 = vmul.f32 %v202, %v101
    %v204 = vsub.f32 %v165, %v203
    %v205 = vsub.f32 %v172, %v203
    %v206 = vadd.f32 %v186, %v193
    %207 = vadd.xlane.f32.xlu0 %v206
    %v208 = vpop.xlane.xlu0 %207
    %v209 = vmul.f32 %v208, %v101
    %v210 = vsub.f32 %v186, %v209
    %v211 = vsub.f32 %v193, %v209
    %213 = vset.pattern.permute.xlu0 0
    %214 = vperm.xlu0 %213, %v31
    %v215 = vpop.permute.xlu0 %214
    %218 = vset.pattern.permute.xlu0 0
    %219 = vperm.xlu0 %218, %v32
    %v220 = vpop.permute.xlu0 %219
    %223 = vset.pattern.permute.xlu0 0
    %224 = vperm.xlu0 %223, %v33
    %v225 = vpop.permute.xlu0 %224
    %228 = vset.pattern.permute.xlu0 0
    %229 = vperm.xlu0 %228, %v34
    %v230 = vpop.permute.xlu0 %229
    %v232 = vmul.f32 %v215, %v198
    %v233 = vmul.f32 %v215, %v199
    %v234 = vmul.f32 %v220, %v198
    %v235 = vmul.f32 %v220, %v199
    %v236 = vmul.f32 %v225, %v198
    %v237 = vmul.f32 %v225, %v199
    %v238 = vmul.f32 %v230, %v198
    %v239 = vmul.f32 %v230, %v199
    %240 = vset.pattern.permute.xlu0 1
    %241 = vperm.xlu0 %240, %v31
    %v242 = vpop.permute.xlu0 %241
    %244 = vset.pattern.permute.xlu0 1
    %245 = vperm.xlu0 %244, %v32
    %v246 = vpop.permute.xlu0 %245
    %248 = vset.pattern.permute.xlu0 1
    %249 = vperm.xlu0 %248, %v33
    %v250 = vpop.permute.xlu0 %249
    %252 = vset.pattern.permute.xlu0 1
    %253 = vperm.xlu0 %252, %v34
    %v254 = vpop.permute.xlu0 %253
    %v256 = vmul.f32 %v242, %v204
    %v257 = vmul.f32 %v242, %v205
    %v258 = vmul.f32 %v246, %v204
    %v259 = vmul.f32 %v246, %v205
    %v260 = vmul.f32 %v250, %v204
    %v261 = vmul.f32 %v250, %v205
    %v262 = vmul.f32 %v254, %v204
    %v263 = vmul.f32 %v254, %v205
    %v264 = vadd.f32 %v232, %v256
    %v265 = vadd.f32 %v233, %v257
    %v266 = vadd.f32 %v234, %v258
    %v267 = vadd.f32 %v235, %v259
    %v268 = vadd.f32 %v236, %v260
    %v269 = vadd.f32 %v237, %v261
    %v270 = vadd.f32 %v238, %v262
    %v271 = vadd.f32 %v239, %v263
    %272 = vset.pattern.permute.xlu0 2
    %273 = vperm.xlu0 %272, %v31
    %v274 = vpop.permute.xlu0 %273
    %276 = vset.pattern.permute.xlu0 2
    %277 = vperm.xlu0 %276, %v32
    %v278 = vpop.permute.xlu0 %277
    %280 = vset.pattern.permute.xlu0 2
    %281 = vperm.xlu0 %280, %v33
    %v282 = vpop.permute.xlu0 %281
    %284 = vset.pattern.permute.xlu0 2
    %285 = vperm.xlu0 %284, %v34
    %v286 = vpop.permute.xlu0 %285
    %v288 = vmul.f32 %v274, %v210
    %v289 = vmul.f32 %v274, %v211
    %v290 = vmul.f32 %v278, %v210
    %v291 = vmul.f32 %v278, %v211
    %v292 = vmul.f32 %v282, %v210
    %v293 = vmul.f32 %v282, %v211
    %v294 = vmul.f32 %v286, %v210
    %v295 = vmul.f32 %v286, %v211
    %v296 = vadd.f32 %v264, %v288
    %v297 = vadd.f32 %v265, %v289
    %v298 = vadd.f32 %v266, %v290
    %v299 = vadd.f32 %v267, %v291
    %v300 = vadd.f32 %v268, %v292
    %v301 = vadd.f32 %v269, %v293
    %v302 = vadd.f32 %v270, %v294
    %v303 = vadd.f32 %v271, %v295
    %305 = vset.pattern.permute.xlu0 0
    %306 = vperm.xlu0 %305, %v35
    %v307 = vpop.permute.xlu0 %306
    %310 = vset.pattern.permute.xlu0 0
    %311 = vperm.xlu0 %310, %v36
    %v312 = vpop.permute.xlu0 %311
    %315 = vset.pattern.permute.xlu0 0
    %316 = vperm.xlu0 %315, %v37
    %v317 = vpop.permute.xlu0 %316
    %320 = vset.pattern.permute.xlu0 0
    %321 = vperm.xlu0 %320, %v38
    %v322 = vpop.permute.xlu0 %321
    %v324 = vadd.f32 %v296, %v307
    %v325 = vadd.f32 %v297, %v307
    %v326 = vadd.f32 %v298, %v312
    %v327 = vadd.f32 %v299, %v312
    %v328 = vadd.f32 %v300, %v317
    %v329 = vadd.f32 %v301, %v317
    %v330 = vadd.f32 %v302, %v322
    %v331 = vadd.f32 %v303, %v322
    %v332 = vmax.f32 %v324, 0.0
    %v333 = vmax.f32 %v325, 0.0
    %v334 = vmax.f32 %v326, 0.0
    %v335 = vmax.f32 %v327, 0.0
    %v336 = vmax.f32 %v328, 0.0
    %v337 = vmax.f32 %v329, 0.0
    %v338 = vmax.f32 %v330, 0.0
    %v339 = vmax.f32 %v331, 0.0
    %v340 = vmax.f32 %v332, %v333
    %341 = vmax.xlane.f32.xlu0 %v340
    %v342 = vpop.xlane.xlu0 %341
    %v343 = vmax.f32 %v334, %v335
    %344 = vmax.xlane.f32.xlu0 %v343
    %v345 = vpop.xlane.xlu0 %344
    %v346 = vmax.f32 %v336, %v337
    %347 = vmax.xlane.f32.xlu0 %v346
    %v348 = vpop.xlane.xlu0 %347
    %v349 = vmax.f32 %v338, %v339
    %350 = vmax.xlane.f32.xlu0 %v349
    %v351 = vpop.xlane.xlu0 %350
    %v352 = vpack.c.bf16 %v334, %v332
    %v353 = vpack.c.bf16 %v335, %v333
    %v354 = vpack.c.bf16 %v338, %v336
    %v355 = vpack.c.bf16 %v339, %v337
    %v356 = vpack.c.bf16 %v345, %v342
    %v357 = vpack.c.bf16 %v351, %v348
    %359 = vset.pattern.permute.xlu0 0
    %360 = vperm.xlu0 %359, %v44
    %v361 = vpop.permute.xlu0 %360
    %364 = vset.pattern.permute.xlu0 0
    %365 = vperm.xlu0 %364, %v45
    %v366 = vpop.permute.xlu0 %365
    %369 = vset.pattern.permute.xlu0 0
    %370 = vperm.xlu0 %369, %v46
    %v371 = vpop.permute.xlu0 %370
    %vm373 = vcmask 523264
    %v375 = vsel %vm373, %v42, 0
    %v378 = vsel %vm373, %v43, 0
    %380 = vmatpush.bf16.msra.mxu0 0
    %381 = vmatpush.bf16.msra.mxu0 0
    %382 = vmatpush.bf16.msra.mxu0 0
    %383 = vmatpush.bf16.msra.mxu0 0
    %384 = vmatpush.bf16.msra.mxu0 %v357
    %385 = vmatpush.bf16.msra.mxu0 %v356
    %386 = vmatpush.bf16.msra.mxu0 %v354
    %387 = vmatpush.bf16.msra.mxu0 %v352
    %388 = vmatmul.bf16.gmra.mxu0 %v375
    %v389 = vpop.f32.mrf.mxu0
    %v390 = vadd.f32 %v361, %v389
    %v391 = vpop.f32.mrf.mxu0
    %v392 = vadd.f32 %v366, %v391
    %393 = vmatmul.bf16.gmra.mxu0 %v378
    %v394 = vpop.f32.mrf.mxu0
    %v395 = vadd.f32 %v371, %v394
    %v396 = vpop.f32.mrf.mxu0
    %397 = vdwg.mxu0
    %398 = vmatpush.bf16.msra.mxu0 0
    %399 = vmatpush.bf16.msra.mxu0 0
    %400 = vmatpush.bf16.msra.mxu0 0
    %401 = vmatpush.bf16.msra.mxu0 0
    %402 = vmatpush.bf16.msra.mxu0 %v357
    %403 = vmatpush.bf16.msra.mxu0 %v356
    %404 = vmatpush.bf16.msra.mxu0 %v355
    %405 = vmatpush.bf16.msra.mxu0 %v353
    %406 = vmatmul.bf16.gmra.mxu0 %v375
    %v407 = vpop.f32.mrf.mxu0
    %v408 = vadd.f32 %v361, %v407
    %v409 = vpop.f32.mrf.mxu0
    %v410 = vadd.f32 %v366, %v409
    %411 = vmatmul.bf16.gmra.mxu0 %v378
    %v412 = vpop.f32.mrf.mxu0
    %v413 = vadd.f32 %v371, %v412
    %v414 = vpop.f32.mrf.mxu0
    %415 = vdwg.mxu0
    %v416 = vsub.f32 0.0, %v390
    %v417 = vsub.f32 0.0, %v408
    %v418 = vsub.f32 0.0, %v392
    %v419 = vsub.f32 0.0, %v410
    %v420 = vsub.f32 0.0, %v395
    %v421 = vsub.f32 0.0, %v413
    %v422 = vmul.f32 %v416, 1.442695
    %v423 = vpow.pop %v422
    %v424 = vmul.f32 %v417, 1.442695
    %v425 = vpow.pop %v424
    %v426 = vmul.f32 %v418, 1.442695
    %v427 = vpow.pop %v426
    %v428 = vmul.f32 %v419, 1.442695
    %v429 = vpow.pop %v428
    %v430 = vmul.f32 %v420, 1.442695
    %v431 = vpow.pop %v430
    %v432 = vmul.f32 %v421, 1.442695
    %v433 = vpow.pop %v432
    %v434 = vadd.f32 %v423, 1.0
    %v435 = vadd.f32 %v425, 1.0
    %v436 = vadd.f32 %v427, 1.0
    %v437 = vadd.f32 %v429, 1.0
    %v438 = vadd.f32 %v431, 1.0
    %v439 = vadd.f32 %v433, 1.0
    %v440 = vrcp.pop %v434
    %v441 = vrcp.pop %v435
    %v442 = vrcp.pop %v436
    %v443 = vrcp.pop %v437
    %v444 = vrcp.pop %v438
    %v445 = vrcp.pop %v439
    %446 = vst [vmem:[%s3] sm:$0xff] %v440
    %447 = vst [vmem:[%s3 + $0x8] sm:$0xff] %v441
    %448 = vst [vmem:[%s3 + $0x10] sm:$0xff] %v442
    %449 = vst [vmem:[%s3 + $0x18] sm:$0xff] %v443
    %450 = vst [vmem:[%s3 + $0x20] sm:$0xff] %v444
    %451 = vst [vmem:[%s3 + $0x28] sm:$0xff] %v445
    %v452 = vadd.f32 %v440, %v441
    %453 = vadd.xlane.f32.xlu0 %v452
    %v454 = vpop.xlane.xlu0 %453
    %v455 = vadd.f32 %v442, %v443
    %456 = vadd.xlane.f32.xlu0 %v455
    %v457 = vpop.xlane.xlu0 %456
    %v458 = vadd.f32 %v444, %v445
    %459 = vadd.xlane.f32.xlu0 %v458
    %v460 = vpop.xlane.xlu0 %459
    %v461 = vmul.f32 %v454, %v101
    %v462 = vmul.f32 %v457, %v101
    %v463 = vmul.f32 %v460, %v101
    %vm464 = vcmask 7168
    %465 = vst.msk [vmem:[%s4] sm:$0xff] %vm464, %v461
    %466 = vst.msk [vmem:[%s4 + $0x8] sm:$0xff] %vm464, %v462
    %467 = vst.msk [vmem:[%s4 + $0x10] sm:$0xff] %vm464, %v463
    %s468 = scalar_lea.vmem %s1, 24
    %v469 = vld [vmem:[%s468] sm:$0xff]
    %s470 = scalar_lea.vmem %s1, 32
    %v471 = vld [vmem:[%s470] sm:$0xff]
    %s472 = scalar_lea.vmem %s1, 40
    %v473 = vld [vmem:[%s472] sm:$0xff]
    %s474 = sadd.s32 %s30, 1
    %s475 = smul.u32 %s474, 128
    %s476 = sld [smem:[#allocation2 + %s475]]
    %s477 = sadd.s32 %s475, 1
    %s478 = sld [smem:[#allocation2 + %s477]]
    %s479 = sadd.s32 %s475, 2
    %s480 = sld [smem:[#allocation2 + %s479]]
    %v481 = vstv %s476
    %v482 = vsub.f32 %v469, %v481
    %v483 = vstv %s478
    %v484 = vsub.f32 %v471, %v483
    %v485 = vstv %s480
    %v486 = vsub.f32 %v473, %v485
    %v487 = vmul.f32 %v482, %v482
    %v488 = vmul.f32 %v484, %v484
    %v489 = vadd.f32 %v487, %v488
    %v490 = vmul.f32 %v486, %v486
    %v491 = vadd.f32 %v489, %v490
    %v492 = vrsqrt.pop %v491
    %v493 = vmul.f32 %v492, %v491
    %v494 = vmul.f32 %v493, %v492
    %v495 = vmul.f32 0.5, %v494
    %v496 = vsub.f32 1.5, %v495
    %v497 = vmul.f32 %v492, %v496
    %v498 = vmul.f32 %v491, %v497
    %vm499 = vcmp.eq.f32.partialorder %v491, inf
    %v500 = vsel %vm499, %v491, %v498
    %vm501 = vcmp.eq.f32.partialorder %v491, 0.0
    %v502 = vand.u32 %v491, 2147483648
    %v503 = vsel %vm501, %v502, %v500
    %505 = vst [vmem:[#allocation1] ss:$2 sm:$0xff] %v503
    %v506 = vld.sshfl [vmem:[#allocation1] sm:$0xff pattern:$0x75316420]
    %v507 = vld.sshfl [vmem:[#allocation1 + $0x8] sm:$0xff pattern:$0x75316420]
    %v510 = vsel %vm89, %v506, 0.0
    %v511 = vsel %vm89, %v507, 0.0
    %v512 = vadd.f32 %v510, %v511
    %513 = vadd.xlane.f32.xlu0 %v512
    %v514 = vpop.xlane.xlu0 %513
    %v515 = vmul.f32 %v514, %v101
    %v516 = vsel %vm89, %v515, inf
    %v517 = vrot.slane %v516, 4
    %v518 = vmin.f32 %v516, %v517
    %v519 = vrot.slane %v518, 2
    %v520 = vmin.f32 %v518, %v519
    %v521 = vrot.slane %v520, 1
    %v522 = vmin.f32 %v520, %v521
    %vm523 = vcmp.le.f32.partialorder %v515, %v522
    %v524 = vsel %vm523, %v48, 4
    %v525 = vsel %vm89, %v524, 2147483647
    %v526 = vrot.slane %v525, 4
    %vm527 = vcmp.lt.s32.totalorder %v525, %v526
    %v528 = vsel %vm527, %v525, %v526
    %v529 = vrot.slane %v528, 2
    %vm530 = vcmp.lt.s32.totalorder %v528, %v529
    %v531 = vsel %vm530, %v528, %v529
    %v532 = vrot.slane %v531, 1
    %vm533 = vcmp.lt.s32.totalorder %v531, %v532
    %v534 = vsel %vm533, %v531, %v532
    %vm535 = vcmp.eq.s32.totalorder %v48, %v534
    %v536 = vsel %vm535, 1, 0
    %v537 = vcvt.s32.f32 %v536
    %v540 = vunpack.c.l.s4 839922192
    %v541 = vunpack.c.0.s8 %v540
    %v542 = vperm.slane %v537, %v541
    %v544 = vmul.f32 %v469, %v542
    %546 = vst [vmem:[#allocation1] ss:$2 sm:$0xff] %v544
    %v547 = vld.sshfl [vmem:[#allocation1] sm:$0xff pattern:$0x75316420]
    %v548 = vld.sshfl [vmem:[#allocation1 + $0x8] sm:$0xff pattern:$0x75316420]
    %v551 = vsel %vm89, %v547, 0.0
    %v552 = vrot.slane %v551, 4
    %v553 = vadd.f32 %v551, %v552
    %v554 = vrot.slane %v553, 2
    %v555 = vadd.f32 %v553, %v554
    %v556 = vrot.slane %v555, 1
    %v557 = vadd.f32 %v555, %v556
    %v558 = vsel %vm89, %v548, 0.0
    %v559 = vrot.slane %v558, 4
    %v560 = vadd.f32 %v558, %v559
    %v561 = vrot.slane %v560, 2
    %v562 = vadd.f32 %v560, %v561
    %v563 = vrot.slane %v562, 1
    %v564 = vadd.f32 %v562, %v563
    %v565 = vmul.f32 %v471, %v542
    %567 = vst [vmem:[#allocation1] ss:$2 sm:$0xff] %v565
    %v568 = vld.sshfl [vmem:[#allocation1] sm:$0xff pattern:$0x75316420]
    %v569 = vld.sshfl [vmem:[#allocation1 + $0x8] sm:$0xff pattern:$0x75316420]
    %v572 = vsel %vm89, %v568, 0.0
    %v573 = vrot.slane %v572, 4
    %v574 = vadd.f32 %v572, %v573
    %v575 = vrot.slane %v574, 2
    %v576 = vadd.f32 %v574, %v575
    %v577 = vrot.slane %v576, 1
    %v578 = vadd.f32 %v576, %v577
    %v579 = vsel %vm89, %v569, 0.0
    %v580 = vrot.slane %v579, 4
    %v581 = vadd.f32 %v579, %v580
    %v582 = vrot.slane %v581, 2
    %v583 = vadd.f32 %v581, %v582
    %v584 = vrot.slane %v583, 1
    %v585 = vadd.f32 %v583, %v584
    %v586 = vmul.f32 %v473, %v542
    %588 = vst [vmem:[#allocation1] ss:$2 sm:$0xff] %v586
    %v589 = vld.sshfl [vmem:[#allocation1] sm:$0xff pattern:$0x75316420]
    %v590 = vld.sshfl [vmem:[#allocation1 + $0x8] sm:$0xff pattern:$0x75316420]
    %v593 = vsel %vm89, %v589, 0.0
    %v594 = vrot.slane %v593, 4
    %v595 = vadd.f32 %v593, %v594
    %v596 = vrot.slane %v595, 2
    %v597 = vadd.f32 %v595, %v596
    %v598 = vrot.slane %v597, 1
    %v599 = vadd.f32 %v597, %v598
    %v600 = vsel %vm89, %v590, 0.0
    %v601 = vrot.slane %v600, 4
    %v602 = vadd.f32 %v600, %v601
    %v603 = vrot.slane %v602, 2
    %v604 = vadd.f32 %v602, %v603
    %v605 = vrot.slane %v604, 1
    %v606 = vadd.f32 %v604, %v605
    %v607 = vadd.f32 %v557, %v564
    %608 = vadd.xlane.f32.xlu0 %v607
    %v609 = vpop.xlane.xlu0 %608
    %v610 = vmul.f32 %v609, %v101
    %v611 = vsub.f32 %v557, %v610
    %v612 = vsub.f32 %v564, %v610
    %v613 = vadd.f32 %v578, %v585
    %614 = vadd.xlane.f32.xlu0 %v613
    %v615 = vpop.xlane.xlu0 %614
    %v616 = vmul.f32 %v615, %v101
    %v617 = vsub.f32 %v578, %v616
    %v618 = vsub.f32 %v585, %v616
    %v619 = vadd.f32 %v599, %v606
    %620 = vadd.xlane.f32.xlu0 %v619
    %v621 = vpop.xlane.xlu0 %620
    %v622 = vmul.f32 %v621, %v101
    %v623 = vsub.f32 %v599, %v622
    %v624 = vsub.f32 %v606, %v622
    %v625 = vmul.f32 %v215, %v611
    %v626 = vmul.f32 %v215, %v612
    %v627 = vmul.f32 %v220, %v611
    %v628 = vmul.f32 %v220, %v612
    %v629 = vmul.f32 %v225, %v611
    %v630 = vmul.f32 %v225, %v612
    %v631 = vmul.f32 %v230, %v611
    %v632 = vmul.f32 %v230, %v612
    %v633 = vmul.f32 %v242, %v617
    %v634 = vmul.f32 %v242, %v618
    %v635 = vmul.f32 %v246, %v617
    %v636 = vmul.f32 %v246, %v618
    %v637 = vmul.f32 %v250, %v617
    %v638 = vmul.f32 %v250, %v618
    %v639 = vmul.f32 %v254, %v617
    %v640 = vmul.f32 %v254, %v618
    %v641 = vadd.f32 %v625, %v633
    %v642 = vadd.f32 %v626, %v634
    %v643 = vadd.f32 %v627, %v635
    %v644 = vadd.f32 %v628, %v636
    %v645 = vadd.f32 %v629, %v637
    %v646 = vadd.f32 %v630, %v638
    %v647 = vadd.f32 %v631, %v639
    %v648 = vadd.f32 %v632, %v640
    %v649 = vmul.f32 %v274, %v623
    %v650 = vmul.f32 %v274, %v624
    %v651 = vmul.f32 %v278, %v623
    %v652 = vmul.f32 %v278, %v624
    %v653 = vmul.f32 %v282, %v623
    %v654 = vmul.f32 %v282, %v624
    %v655 = vmul.f32 %v286, %v623
    %v656 = vmul.f32 %v286, %v624
    %v657 = vadd.f32 %v641, %v649
    %v658 = vadd.f32 %v642, %v650
    %v659 = vadd.f32 %v643, %v651
    %v660 = vadd.f32 %v644, %v652
    %v661 = vadd.f32 %v645, %v653
    %v662 = vadd.f32 %v646, %v654
    %v663 = vadd.f32 %v647, %v655
    %v664 = vadd.f32 %v648, %v656
    %v665 = vadd.f32 %v657, %v307
    %v666 = vadd.f32 %v658, %v307
    %v667 = vadd.f32 %v659, %v312
    %v668 = vadd.f32 %v660, %v312
    %v669 = vadd.f32 %v661, %v317
    %v670 = vadd.f32 %v662, %v317
    %v671 = vadd.f32 %v663, %v322
    %v672 = vadd.f32 %v664, %v322
    %v673 = vmax.f32 %v665, 0.0
    %v674 = vmax.f32 %v666, 0.0
    %v675 = vmax.f32 %v667, 0.0
    %v676 = vmax.f32 %v668, 0.0
    %v677 = vmax.f32 %v669, 0.0
    %v678 = vmax.f32 %v670, 0.0
    %v679 = vmax.f32 %v671, 0.0
    %v680 = vmax.f32 %v672, 0.0
    %v681 = vmax.f32 %v673, %v674
    %682 = vmax.xlane.f32.xlu0 %v681
    %v683 = vpop.xlane.xlu0 %682
    %v684 = vmax.f32 %v675, %v676
    %685 = vmax.xlane.f32.xlu0 %v684
    %v686 = vpop.xlane.xlu0 %685
    %v687 = vmax.f32 %v677, %v678
    %688 = vmax.xlane.f32.xlu0 %v687
    %v689 = vpop.xlane.xlu0 %688
    %v690 = vmax.f32 %v679, %v680
    %691 = vmax.xlane.f32.xlu0 %v690
    %v692 = vpop.xlane.xlu0 %691
    %v693 = vpack.c.bf16 %v675, %v673
    %v694 = vpack.c.bf16 %v676, %v674
    %v695 = vpack.c.bf16 %v679, %v677
    %v696 = vpack.c.bf16 %v680, %v678
    %v697 = vpack.c.bf16 %v686, %v683
    %v698 = vpack.c.bf16 %v692, %v689
    %699 = vmatpush.bf16.msra.mxu0 0
    %700 = vmatpush.bf16.msra.mxu0 0
    %701 = vmatpush.bf16.msra.mxu0 0
    %702 = vmatpush.bf16.msra.mxu0 0
    %703 = vmatpush.bf16.msra.mxu0 %v698
    %704 = vmatpush.bf16.msra.mxu0 %v697
    %705 = vmatpush.bf16.msra.mxu0 %v695
    %706 = vmatpush.bf16.msra.mxu0 %v693
    %707 = vmatmul.bf16.gmra.mxu0 %v375
    %v708 = vpop.f32.mrf.mxu0
    %v709 = vadd.f32 %v361, %v708
    %v710 = vpop.f32.mrf.mxu0
    %v711 = vadd.f32 %v366, %v710
    %712 = vmatmul.bf16.gmra.mxu0 %v378
    %v713 = vpop.f32.mrf.mxu0
    %v714 = vadd.f32 %v371, %v713
    %v715 = vpop.f32.mrf.mxu0
    %716 = vdwg.mxu0
    %717 = vmatpush.bf16.msra.mxu0 0
    %718 = vmatpush.bf16.msra.mxu0 0
    %719 = vmatpush.bf16.msra.mxu0 0
    %720 = vmatpush.bf16.msra.mxu0 0
    %721 = vmatpush.bf16.msra.mxu0 %v698
    %722 = vmatpush.bf16.msra.mxu0 %v697
    %723 = vmatpush.bf16.msra.mxu0 %v696
    %724 = vmatpush.bf16.msra.mxu0 %v694
    %725 = vmatmul.bf16.gmra.mxu0 %v375
    %v726 = vpop.f32.mrf.mxu0
    %v727 = vadd.f32 %v361, %v726
    %v728 = vpop.f32.mrf.mxu0
    %v729 = vadd.f32 %v366, %v728
    %730 = vmatmul.bf16.gmra.mxu0 %v378
    %v731 = vpop.f32.mrf.mxu0
    %v732 = vadd.f32 %v371, %v731
    %v733 = vpop.f32.mrf.mxu0
    %734 = vdwg.mxu0
    %v735 = vsub.f32 0.0, %v709
    %v736 = vsub.f32 0.0, %v727
    %v737 = vsub.f32 0.0, %v711
    %v738 = vsub.f32 0.0, %v729
    %v739 = vsub.f32 0.0, %v714
    %v740 = vsub.f32 0.0, %v732
    %v741 = vmul.f32 %v735, 1.442695
    %v742 = vpow.pop %v741
    %v743 = vmul.f32 %v736, 1.442695
    %v744 = vpow.pop %v743
    %v745 = vmul.f32 %v737, 1.442695
    %v746 = vpow.pop %v745
    %v747 = vmul.f32 %v738, 1.442695
    %v748 = vpow.pop %v747
    %v749 = vmul.f32 %v739, 1.442695
    %v750 = vpow.pop %v749
    %v751 = vmul.f32 %v740, 1.442695
    %v752 = vpow.pop %v751
    %v753 = vadd.f32 %v742, 1.0
    %v754 = vadd.f32 %v744, 1.0
    %v755 = vadd.f32 %v746, 1.0
    %v756 = vadd.f32 %v748, 1.0
    %v757 = vadd.f32 %v750, 1.0
    %v758 = vadd.f32 %v752, 1.0
    %v759 = vrcp.pop %v753
    %v760 = vrcp.pop %v754
    %v761 = vrcp.pop %v755
    %v762 = vrcp.pop %v756
    %v763 = vrcp.pop %v757
    %v764 = vrcp.pop %v758
    %s765 = scalar_lea.vmem %s3, 48
    %766 = vst [vmem:[%s765] sm:$0xff] %v759
    %767 = vst [vmem:[%s765 + $0x8] sm:$0xff] %v760
    %768 = vst [vmem:[%s765 + $0x10] sm:$0xff] %v761
    %769 = vst [vmem:[%s765 + $0x18] sm:$0xff] %v762
    %770 = vst [vmem:[%s765 + $0x20] sm:$0xff] %v763
    %771 = vst [vmem:[%s765 + $0x28] sm:$0xff] %v764
    %v772 = vadd.f32 %v759, %v760
    %773 = vadd.xlane.f32.xlu0 %v772
    %v774 = vpop.xlane.xlu0 %773
    %v775 = vadd.f32 %v761, %v762
    %776 = vadd.xlane.f32.xlu0 %v775
    %v777 = vpop.xlane.xlu0 %776
    %v778 = vadd.f32 %v763, %v764
    %779 = vadd.xlane.f32.xlu0 %v778
    %v780 = vpop.xlane.xlu0 %779
    %v781 = vmul.f32 %v774, %v101
    %v782 = vmul.f32 %v777, %v101
    %v783 = vmul.f32 %v780, %v101
    %s784 = scalar_lea.vmem %s4, 24
    %785 = vst.msk [vmem:[%s784] sm:$0xff] %vm464, %v781
    %786 = vst.msk [vmem:[%s784 + $0x8] sm:$0xff] %vm464, %v782
    %787 = vst.msk [vmem:[%s784 + $0x10] sm:$0xff] %vm464, %v783
    // Predicated region
    $region18: #{gaze_guided_affordance_forward.1} parent=1 // pred_check
      _
    $region19: #{gaze_guided_affordance_forward.1} parent=1 // pred_check_branch
      %789 = sbr.rel (0) target = $region21
    $region20: #{gaze_guided_affordance_forward.1} parent=1 // pred_region
      _
    $region21: #{gaze_guided_affordance_forward.1} parent=1 // pred_fallthru
      _
    // Predicated region
    $region22: #{gaze_guided_affordance_forward.1} parent=1 // pred_check
      _
    $region23: #{gaze_guided_affordance_forward.1} parent=1 // pred_check_branch
      %791 = sbr.rel (0) target = $region25
    $region24: #{gaze_guided_affordance_forward.1} parent=1 // pred_region
      _
    $region25: #{gaze_guided_affordance_forward.1} parent=1 // pred_fallthru
      _
    // Predicated region
    $region26: #{gaze_guided_affordance_forward.1} parent=1 // pred_check
      _
    $region27: #{gaze_guided_affordance_forward.1} parent=1 // pred_check_branch
      %793 = sbr.rel (0) target = $region29
    $region28: #{gaze_guided_affordance_forward.1} parent=1 // pred_region
      _
    $region29: #{gaze_guided_affordance_forward.1} parent=1 // pred_fallthru
      _
    // Predicated region
    $region30: #{gaze_guided_affordance_forward.1} parent=1 // pred_check
      _
    $region31: #{gaze_guided_affordance_forward.1} parent=1 // pred_check_branch
      %795 = sbr.rel (0) target = $region33
    $region32: #{gaze_guided_affordance_forward.1} parent=1 // pred_region
      _
    $region33: #{gaze_guided_affordance_forward.1} parent=1 // pred_fallthru
      _
    %796 = vsyncpa [#allocation3], 1

</llo_original>
